<compile_context>
chip_gen: v5e
topology: v5e:2x2
jax: 0.10.0
libtpu: 0.0.40
codegen_flags: <defaults>
</compile_context>

<pallas_src>
import jax
import jax.numpy as jnp
from jax.experimental import pallas as pl
from jax.experimental.pallas import tpu as pltpu

# ----------------------------- sizes -----------------------------------------
B = 2             # batch
H = 32            # hid_size
LT = 10           # title sequence length  -> conv(k=3) output length 8
LF = 18           # full  sequence length  -> all three convs output length 16
NCAT = 8          # n_cat_features
NTOK = 50         # n_tokens
CONCAT_FEATURES = 6 * H

LTO = LT - 2            # 8   title conv output length
LFO = LF - 2            # 16  full conv output length (all three convs)
IDS_COLS = LT + LF + 4  # 32  packed ids: [title(10) | pad(2) | full(18) | pad(2)]
TOK_PAD = 64            # one-hot width (>= NTOK, multiple of 8)
OUT_PAD = 128           # every layer output padded to 128 lanes

# weight-slab row offsets (all multiples of 8)
ROW_ET = 0                         # 3 title taps  x (TOK_PAD, 128)
ROW_EF = ROW_ET + 3 * TOK_PAD      # 7 fused full taps x (TOK_PAD, 128)
ROW_IWT = ROW_EF + 7 * TOK_PAD     # inter_dense row block for title (128, 128)
ROW_IWF = ROW_IWT + OUT_PAD        # inter_dense row block for full  (128, 128)
ROW_IWC = ROW_IWF + OUT_PAD        # inter_dense row block for cat   (128, 128)
ROW_FW = ROW_IWC + OUT_PAD         # final_dense (128, 128), col 0 real
SLAB_ROWS = ROW_FW + OUT_PAD       # 1152


# ----------------------------- kernel ----------------------------------------
def three_inputs_kernel(idc_ref, cx_ref, w_ref, fp_ref, out_ref):
    """Whole-array VMEM refs.

    idc_ref : (B*IDS_COLS, 1) int32  packed token ids (pad slots hold NTOK)
    cx_ref  : (B, NCAT)      f32     category features (kept f32 for precision)
    w_ref   : (SLAB_ROWS, 128) bf16  weight slab (emb folded into conv taps)
    fp_ref  : (16, 128)      f32     rows 0-4 biases, rows 8-15 category weight
    out_ref : (B, 128)       f32     lane-dense output (col 0 = result)
    """
    Bk = cx_ref.shape[0]
    f32 = jnp.float32

    # one-hot of the packed ids: row r = b*IDS_COLS + p, lane = token id.
    # Pad slots hold id == NTOK, whose folded-table rows are zero -> exact pad.
    ids = idc_ref[...]                                                    # (B*32, 1)
    tok = jax.lax.broadcasted_iota(jnp.int32, (Bk * IDS_COLS, TOK_PAD), 1)
    oh = jnp.where(ids == tok, 1.0, 0.0)                                  # (B*32, 64) f32
    oh3 = oh.reshape(Bk, IDS_COLS, TOK_PAD)                               # tile-aligned split

    # ---- title branch: 3-tap conv as per-tap (one-hot @ folded table) matmuls
    acc_t = jnp.zeros((Bk * LTO, OUT_PAD), f32)
    for k in range(3):
        sl = oh3[:, k:k + LTO, :].reshape(Bk * LTO, TOK_PAD)
        acc_t = acc_t + jnp.dot(
            sl, w_ref[ROW_ET + k * TOK_PAD:ROW_ET + (k + 1) * TOK_PAD, :],
            preferred_element_type=f32)
    act_t = jnp.maximum(acc_t + fp_ref[0:1, :], 0.0)
    title_sum = jnp.sum(act_t.reshape(Bk, LTO, OUT_PAD), axis=1)          # /LTO folded in IWT

    # ---- full branch: k=3/5/7 convs fused per 7-tap pad-2 window
    acc_f = jnp.zeros((Bk * LFO, OUT_PAD), f32)
    for k in range(7):
        sl = oh3[:, LT + k:LT + k + LFO, :].reshape(Bk * LFO, TOK_PAD)
        acc_f = acc_f + jnp.dot(
            sl, w_ref[ROW_EF + k * TOK_PAD:ROW_EF + (k + 1) * TOK_PAD, :],
            preferred_element_type=f32)
    act_f = jnp.maximum(acc_f + fp_ref[1:2, :], 0.0)
    full_sum = jnp.sum(act_f.reshape(Bk, LFO, OUT_PAD), axis=1)           # /LFO folded in IWF

    # ---- category linear, all-f32 (weight lives in the f32 slab)
    cat = jnp.dot(cx_ref[...], fp_ref[8:8 + NCAT, :],
                  preferred_element_type=f32) + fp_ref[2:3, :]            # (B, 128)

    # ---- inter_dense as three row-block matmuls (no lane concat), ReLU
    h = (jnp.dot(title_sum, w_ref[ROW_IWT:ROW_IWT + OUT_PAD, :], preferred_element_type=f32)
         + jnp.dot(full_sum, w_ref[ROW_IWF:ROW_IWF + OUT_PAD, :], preferred_element_type=f32)
         + jnp.dot(cat, w_ref[ROW_IWC:ROW_IWC + OUT_PAD, :], preferred_element_type=f32)
         + fp_ref[3:4, :])
    h = jnp.maximum(h, 0.0)

    # ---- final dense, 128-lane padded output (col 0 real); lane-dense store
    out_ref[...] = jnp.dot(h, w_ref[ROW_FW:ROW_FW + OUT_PAD, :],
                           preferred_element_type=f32) + fp_ref[4:5, :]


# ----------------------------- param packing ----------------------------------
def pack_params(p):
    """One-time conversion of per-layer params into the 2-operand slab set."""
    bf16 = jnp.bfloat16
    blocks = []

    # Title conv taps with the embedding folded in: ET_k = title_emb @ W_k.
    for k in range(3):
        e = p["title_emb"] @ p["title_conv_w"][k]                         # (NTOK, H)
        blocks.append(jnp.zeros((TOK_PAD, OUT_PAD), jnp.float32)
                      .at[:NTOK, :H].set(e))

    # Fused full convs on the pad-2 7-tap window:
    #   conv1 (k=3, no pad) uses window taps 2..4, conv2 (k=5, pad=1) taps 1..5,
    #   conv3 (k=7, pad=2) taps 0..6.  Output lanes [c1 | c2 | c3] = 0..95.
    for k in range(7):
        wk = jnp.zeros((H, 3 * H), jnp.float32)
        if 2 <= k <= 4:
            wk = wk.at[:, 0 * H:1 * H].set(p["full_conv1_w"][k - 2])
        if 1 <= k <= 5:
            wk = wk.at[:, 1 * H:2 * H].set(p["full_conv2_w"][k - 1])
        wk = wk.at[:, 2 * H:3 * H].set(p["full_conv3_w"][k])
        e = p["full_emb"] @ wk                                            # (NTOK, 3H)
        blocks.append(jnp.zeros((TOK_PAD, OUT_PAD), jnp.float32)
                      .at[:NTOK, :3 * H].set(e))

    # inter_dense row blocks; mean scales (1/LTO, 1/LFO are exact in bf16) folded in.
    iw = p["inter_w"]                                                      # (6H, 2H)
    iwt = jnp.zeros((OUT_PAD, OUT_PAD), jnp.float32).at[:H, :2 * H].set(iw[0:H] / LTO)
    iwf = jnp.zeros((OUT_PAD, OUT_PAD), jnp.float32).at[:3 * H, :2 * H].set(iw[H:4 * H] / LFO)
    iwc = jnp.zeros((OUT_PAD, OUT_PAD), jnp.float32).at[:2 * H, :2 * H].set(iw[4 * H:6 * H])
    fw = jnp.zeros((OUT_PAD, OUT_PAD), jnp.float32).at[:2 * H, 0:1].set(p["final_w"])

    wslab = jnp.concatenate(blocks + [iwt, iwf, iwc, fw], axis=0).astype(bf16)
    assert wslab.shape == (SLAB_ROWS, OUT_PAD), wslab.shape

    # f32 slab: rows 0..4 biases (lane-aligned), rows 8..15 category weight.
    fparams = jnp.zeros((16, OUT_PAD), jnp.float32)
    fparams = fparams.at[0, :H].set(p["title_conv_b"][0])
    fparams = fparams.at[1, :3 * H].set(jnp.concatenate(
        [p["full_conv1_b"][0], p["full_conv2_b"][0], p["full_conv3_b"][0]]))
    fparams = fparams.at[2, :2 * H].set(p["cat_b"][0])
    fparams = fparams.at[3, :2 * H].set(p["inter_b"][0])
    fparams = fparams.at[4, 0].set(p["final_b"][0, 0])
    fparams = fparams.at[8:8 + NCAT, :2 * H].set(p["cat_w"])

    return {"wslab": wslab, "fparams": fparams}


# ----------------------------- wrapper ----------------------------------------
@jax.jit
def three_inputs_net(input1, input2, input3, packed):
    # Only remaining wrapper device work: pack ids into one tiny int32 column
    # (pad slots = NTOK -> zero rows of the folded tables implement the zero-pad).
    nb = input1.shape[0]
    pad = jnp.full((nb, 2), NTOK, jnp.int32)
    ids = jnp.concatenate([input1.astype(jnp.int32), pad,
                           input2.astype(jnp.int32), pad], axis=1)         # (B, 32)
    idc = ids.reshape(nb * IDS_COLS, 1)

    out = pl.pallas_call(
        three_inputs_kernel,
        out_shape=jax.ShapeDtypeStruct((nb, OUT_PAD), jnp.float32),
        in_specs=[pl.BlockSpec(memory_space=pltpu.MemorySpace.VMEM)] * 4,
        out_specs=pl.BlockSpec(memory_space=pltpu.MemorySpace.VMEM),
        cost_estimate=pl.CostEstimate(flops=4_800_000, transcendentals=0,
                                      bytes_accessed=330_000),
        compiler_params=pltpu.CompilerParams(),
    )(idc, input3.astype(jnp.float32), packed["wslab"], packed["fparams"])
    # TODO(synk): for large batch, round B up to a multiple of 8 and add a
    # ("parallel",) batch grid so v7x's two TensorCores split the work.
    return out[:, :1]                                                       # (B, 1)


# ----------------------------- params -----------------------------------------
def init_params(key):
    ks = jax.random.split(key, 16)
    def w(k, shape, fan_in):
        return jax.random.normal(k, shape, jnp.float32) / jnp.sqrt(jnp.float32(fan_in))
    return {
        "title_emb":    w(ks[0], (NTOK, H), H),
        "full_emb":     w(ks[1], (NTOK, H), H),
        "title_conv_w": w(ks[2], (3, H, H), 3 * H),     # (K, C_in, C_out)
        "title_conv_b": w(ks[3], (1, H), 3 * H),
        "full_conv1_w": w(ks[4], (3, H, H), 3 * H),
        "full_conv1_b": w(ks[5], (1, H), 3 * H),
        "full_conv2_w": w(ks[6], (5, H, H), 5 * H),
        "full_conv2_b": w(ks[7], (1, H), 5 * H),
        "full_conv3_w": w(ks[8], (7, H, H), 7 * H),
        "full_conv3_b": w(ks[9], (1, H), 7 * H),
        "cat_w":        w(ks[10], (NCAT, 2 * H), NCAT),
        "cat_b":        w(ks[11], (1, 2 * H), NCAT),
        "inter_w":      w(ks[12], (CONCAT_FEATURES, 2 * H), CONCAT_FEATURES),
        "inter_b":      w(ks[13], (1, 2 * H), CONCAT_FEATURES),
        "final_w":      w(ks[14], (2 * H, 1), 2 * H),
        "final_b":      w(ks[15], (1, 1), 2 * H),
    }


# ----------------------------- pure-JAX reference ------------------------------
def reference(input1, input2, input3, p):
    def conv1d(x, w, b, pad):
        if pad:
            x = jnp.pad(x, ((0, 0), (pad, pad), (0, 0)))
        K = w.shape[0]
        lout = x.shape[1] - K + 1
        acc = jnp.zeros((x.shape[0], lout, w.shape[2]), jnp.float32)
        for k in range(K):
            acc = acc + jnp.einsum("blc,co->blo", x[:, k:k + lout, :], w[k])
        return acc + b[None]
    tx = jnp.take(p["title_emb"], input1, axis=0)
    fx = jnp.take(p["full_emb"], input2, axis=0)
    title = jnp.mean(jax.nn.relu(conv1d(tx, p["title_conv_w"], p["title_conv_b"], 0)), axis=1)
    f1 = jnp.mean(jax.nn.relu(conv1d(fx, p["full_conv1_w"], p["full_conv1_b"], 0)), axis=1)
    f2 = jnp.mean(jax.nn.relu(conv1d(fx, p["full_conv2_w"], p["full_conv2_b"], 1)), axis=1)
    f3 = jnp.mean(jax.nn.relu(conv1d(fx, p["full_conv3_w"], p["full_conv3_b"], 2)), axis=1)
    cat = input3 @ p["cat_w"] + p["cat_b"]
    concat = jnp.concatenate([title, f1, f2, f3, cat], axis=1)
    h = jax.nn.relu(concat @ p["inter_w"] + p["inter_b"])
    return h @ p["final_w"] + p["final_b"]


# ----------------------------- main --------------------------------------------
if __name__ == "__main__":
    key = jax.random.PRNGKey(0)
    k1, k2, k3, kp = jax.random.split(key, 4)
    input1 = jax.random.randint(k1, (B, LT), 0, NTOK)                 # title token ids
    input2 = jax.random.randint(k2, (B, LF), 0, NTOK)                 # full-text token ids
    input3 = jax.random.normal(k3, (B, NCAT), jnp.float32)            # category features
    params = init_params(kp)
    packed = pack_params(params)

    out = three_inputs_net(input1, input2, input3, packed)
    jax.block_until_ready(out)

    ref = reference(input1, input2, input3, params)
    assert out.shape == (B, 1), out.shape
    # Conv/emb tables are bf16 in the kernel (f32 accumulation), so use a
    # bf16-appropriate tolerance.
    assert jnp.allclose(out, ref, atol=2e-2, rtol=2e-2), (out, ref)

    print("KERNEL_OK")
</pallas_src>

<mosaic_0001>
module attributes {stable_mosaic.version = 11 : i64} {
  func.func @three_inputs_kernel(%arg0: memref<64x1xi32, #tpu.memory_space<vmem>>, %arg1: memref<2x8xf32, #tpu.memory_space<vmem>>, %arg2: memref<1152x128xbf16, #tpu.memory_space<vmem>>, %arg3: memref<16x128xf32, #tpu.memory_space<vmem>>, %arg4: memref<2x128xf32, #tpu.memory_space<vmem>>) attributes {dimension_semantics = [], scalar_prefetch = 0 : i64, scratch_operands = 0 : i64, tpu.core_type = #tpu.core_type<tc>} {
    %c0 = arith.constant 0 : index
    %c0_0 = arith.constant 0 : index
    %0 = vector.load %arg0[%c0, %c0_0] : memref<64x1xi32, #tpu.memory_space<vmem>>, vector<64x1xi32>
    %1 = tpu.iota {dimensions = array<i32: 1>} : vector<64x64xi32>
    %2 = vector.broadcast %0 : vector<64x1xi32> to vector<64x64xi32>
    %3 = arith.cmpi eq, %2, %1 : vector<64x64xi32>
    %cst = arith.constant 1.000000e+00 : f32
    %cst_1 = arith.constant 0.000000e+00 : f32
    %4 = vector.broadcast %cst : f32 to vector<64x64xf32>
    %5 = vector.broadcast %cst_1 : f32 to vector<64x64xf32>
    %6 = arith.select %3, %4, %5 : vector<64x64xi1>, vector<64x64xf32>
    %7 = vector.shape_cast %6 : vector<64x64xf32> to vector<2x32x64xf32>
    %cst_2 = arith.constant 0.000000e+00 : f32
    %8 = vector.broadcast %cst_2 : f32 to vector<16x128xf32>
    %9 = vector.extract_strided_slice %7 {offsets = [0, 0, 0], sizes = [2, 8, 64], strides = [1, 1, 1]} : vector<2x32x64xf32> to vector<2x8x64xf32>
    %10 = vector.shape_cast %9 : vector<2x8x64xf32> to vector<16x64xf32>
    %c0_3 = arith.constant 0 : index
    %c0_4 = arith.constant 0 : index
    %11 = vector.load %arg2[%c0_3, %c0_4] : memref<1152x128xbf16, #tpu.memory_space<vmem>>, vector<64x128xbf16>
    %cst_5 = arith.constant dense<0.000000e+00> : vector<16x128xf32>
    %12 = tpu.matmul %10, %11, %cst_5 {dimension_numbers = #tpu.dot_dimension_numbers<[1], [0], [0], [1], [0, 0, 1, 1], [], []>} : vector<16x64xf32>, vector<64x128xbf16>, vector<16x128xf32> -> vector<16x128xf32>
    %13 = arith.addf %8, %12 : vector<16x128xf32>
    %14 = vector.extract_strided_slice %7 {offsets = [0, 1, 0], sizes = [2, 8, 64], strides = [1, 1, 1]} : vector<2x32x64xf32> to vector<2x8x64xf32>
    %15 = vector.shape_cast %14 : vector<2x8x64xf32> to vector<16x64xf32>
    %c64 = arith.constant 64 : index
    %c0_6 = arith.constant 0 : index
    %16 = vector.load %arg2[%c64, %c0_6] : memref<1152x128xbf16, #tpu.memory_space<vmem>>, vector<64x128xbf16>
    %cst_7 = arith.constant dense<0.000000e+00> : vector<16x128xf32>
    %17 = tpu.matmul %15, %16, %cst_7 {dimension_numbers = #tpu.dot_dimension_numbers<[1], [0], [0], [1], [0, 0, 1, 1], [], []>} : vector<16x64xf32>, vector<64x128xbf16>, vector<16x128xf32> -> vector<16x128xf32>
    %18 = arith.addf %13, %17 : vector<16x128xf32>
    %19 = vector.extract_strided_slice %7 {offsets = [0, 2, 0], sizes = [2, 8, 64], strides = [1, 1, 1]} : vector<2x32x64xf32> to vector<2x8x64xf32>
    %20 = vector.shape_cast %19 : vector<2x8x64xf32> to vector<16x64xf32>
    %c128 = arith.constant 128 : index
    %c0_8 = arith.constant 0 : index
    %21 = vector.load %arg2[%c128, %c0_8] : memref<1152x128xbf16, #tpu.memory_space<vmem>>, vector<64x128xbf16>
    %cst_9 = arith.constant dense<0.000000e+00> : vector<16x128xf32>
    %22 = tpu.matmul %20, %21, %cst_9 {dimension_numbers = #tpu.dot_dimension_numbers<[1], [0], [0], [1], [0, 0, 1, 1], [], []>} : vector<16x64xf32>, vector<64x128xbf16>, vector<16x128xf32> -> vector<16x128xf32>
    %23 = arith.addf %18, %22 : vector<16x128xf32>
    %c0_10 = arith.constant 0 : index
    %c0_11 = arith.constant 0 : index
    %24 = vector.load %arg3[%c0_10, %c0_11] : memref<16x128xf32, #tpu.memory_space<vmem>>, vector<1x128xf32>
    %25 = vector.broadcast %24 : vector<1x128xf32> to vector<16x128xf32>
    %26 = arith.addf %23, %25 : vector<16x128xf32>
    %cst_12 = arith.constant 0.000000e+00 : f32
    %27 = vector.broadcast %cst_12 : f32 to vector<16x128xf32>
    %28 = arith.maximumf %26, %27 : vector<16x128xf32>
    %29 = vector.shape_cast %28 : vector<16x128xf32> to vector<2x8x128xf32>
    %cst_13 = arith.constant dense<0.000000e+00> : vector<2x128xf32>
    %30 = vector.multi_reduction <add>, %29, %cst_13 [1] : vector<2x8x128xf32> to vector<2x128xf32>
    %cst_14 = arith.constant 0.000000e+00 : f32
    %31 = vector.broadcast %cst_14 : f32 to vector<32x128xf32>
    %32 = vector.extract_strided_slice %7 {offsets = [0, 10, 0], sizes = [2, 16, 64], strides = [1, 1, 1]} : vector<2x32x64xf32> to vector<2x16x64xf32>
    %33 = vector.shape_cast %32 : vector<2x16x64xf32> to vector<32x64xf32>
    %c192 = arith.constant 192 : index
    %c0_15 = arith.constant 0 : index
    %34 = vector.load %arg2[%c192, %c0_15] : memref<1152x128xbf16, #tpu.memory_space<vmem>>, vector<64x128xbf16>
    %cst_16 = arith.constant dense<0.000000e+00> : vector<32x128xf32>
    %35 = tpu.matmul %33, %34, %cst_16 {dimension_numbers = #tpu.dot_dimension_numbers<[1], [0], [0], [1], [0, 0, 1, 1], [], []>} : vector<32x64xf32>, vector<64x128xbf16>, vector<32x128xf32> -> vector<32x128xf32>
    %36 = arith.addf %31, %35 : vector<32x128xf32>
    %37 = vector.extract_strided_slice %7 {offsets = [0, 11, 0], sizes = [2, 16, 64], strides = [1, 1, 1]} : vector<2x32x64xf32> to vector<2x16x64xf32>
    %38 = vector.shape_cast %37 : vector<2x16x64xf32> to vector<32x64xf32>
    %c256 = arith.constant 256 : index
    %c0_17 = arith.constant 0 : index
    %39 = vector.load %arg2[%c256, %c0_17] : memref<1152x128xbf16, #tpu.memory_space<vmem>>, vector<64x128xbf16>
    %cst_18 = arith.constant dense<0.000000e+00> : vector<32x128xf32>
    %40 = tpu.matmul %38, %39, %cst_18 {dimension_numbers = #tpu.dot_dimension_numbers<[1], [0], [0], [1], [0, 0, 1, 1], [], []>} : vector<32x64xf32>, vector<64x128xbf16>, vector<32x128xf32> -> vector<32x128xf32>
    %41 = arith.addf %36, %40 : vector<32x128xf32>
    %42 = vector.extract_strided_slice %7 {offsets = [0, 12, 0], sizes = [2, 16, 64], strides = [1, 1, 1]} : vector<2x32x64xf32> to vector<2x16x64xf32>
    %43 = vector.shape_cast %42 : vector<2x16x64xf32> to vector<32x64xf32>
    %c320 = arith.constant 320 : index
    %c0_19 = arith.constant 0 : index
    %44 = vector.load %arg2[%c320, %c0_19] : memref<1152x128xbf16, #tpu.memory_space<vmem>>, vector<64x128xbf16>
    %cst_20 = arith.constant dense<0.000000e+00> : vector<32x128xf32>
    %45 = tpu.matmul %43, %44, %cst_20 {dimension_numbers = #tpu.dot_dimension_numbers<[1], [0], [0], [1], [0, 0, 1, 1], [], []>} : vector<32x64xf32>, vector<64x128xbf16>, vector<32x128xf32> -> vector<32x128xf32>
    %46 = arith.addf %41, %45 : vector<32x128xf32>
    %47 = vector.extract_strided_slice %7 {offsets = [0, 13, 0], sizes = [2, 16, 64], strides = [1, 1, 1]} : vector<2x32x64xf32> to vector<2x16x64xf32>
    %48 = vector.shape_cast %47 : vector<2x16x64xf32> to vector<32x64xf32>
    %c384 = arith.constant 384 : index
    %c0_21 = arith.constant 0 : index
    %49 = vector.load %arg2[%c384, %c0_21] : memref<1152x128xbf16, #tpu.memory_space<vmem>>, vector<64x128xbf16>
    %cst_22 = arith.constant dense<0.000000e+00> : vector<32x128xf32>
    %50 = tpu.matmul %48, %49, %cst_22 {dimension_numbers = #tpu.dot_dimension_numbers<[1], [0], [0], [1], [0, 0, 1, 1], [], []>} : vector<32x64xf32>, vector<64x128xbf16>, vector<32x128xf32> -> vector<32x128xf32>
    %51 = arith.addf %46, %50 : vector<32x128xf32>
    %52 = vector.extract_strided_slice %7 {offsets = [0, 14, 0], sizes = [2, 16, 64], strides = [1, 1, 1]} : vector<2x32x64xf32> to vector<2x16x64xf32>
    %53 = vector.shape_cast %52 : vector<2x16x64xf32> to vector<32x64xf32>
    %c448 = arith.constant 448 : index
    %c0_23 = arith.constant 0 : index
    %54 = vector.load %arg2[%c448, %c0_23] : memref<1152x128xbf16, #tpu.memory_space<vmem>>, vector<64x128xbf16>
    %cst_24 = arith.constant dense<0.000000e+00> : vector<32x128xf32>
    %55 = tpu.matmul %53, %54, %cst_24 {dimension_numbers = #tpu.dot_dimension_numbers<[1], [0], [0], [1], [0, 0, 1, 1], [], []>} : vector<32x64xf32>, vector<64x128xbf16>, vector<32x128xf32> -> vector<32x128xf32>
    %56 = arith.addf %51, %55 : vector<32x128xf32>
    %57 = vector.extract_strided_slice %7 {offsets = [0, 15, 0], sizes = [2, 16, 64], strides = [1, 1, 1]} : vector<2x32x64xf32> to vector<2x16x64xf32>
    %58 = vector.shape_cast %57 : vector<2x16x64xf32> to vector<32x64xf32>
    %c512 = arith.constant 512 : index
    %c0_25 = arith.constant 0 : index
    %59 = vector.load %arg2[%c512, %c0_25] : memref<1152x128xbf16, #tpu.memory_space<vmem>>, vector<64x128xbf16>
    %cst_26 = arith.constant dense<0.000000e+00> : vector<32x128xf32>
    %60 = tpu.matmul %58, %59, %cst_26 {dimension_numbers = #tpu.dot_dimension_numbers<[1], [0], [0], [1], [0, 0, 1, 1], [], []>} : vector<32x64xf32>, vector<64x128xbf16>, vector<32x128xf32> -> vector<32x128xf32>
    %61 = arith.addf %56, %60 : vector<32x128xf32>
    %62 = vector.extract_strided_slice %7 {offsets = [0, 16, 0], sizes = [2, 16, 64], strides = [1, 1, 1]} : vector<2x32x64xf32> to vector<2x16x64xf32>
    %63 = vector.shape_cast %62 : vector<2x16x64xf32> to vector<32x64xf32>
    %c576 = arith.constant 576 : index
    %c0_27 = arith.constant 0 : index
    %64 = vector.load %arg2[%c576, %c0_27] : memref<1152x128xbf16, #tpu.memory_space<vmem>>, vector<64x128xbf16>
    %cst_28 = arith.constant dense<0.000000e+00> : vector<32x128xf32>
    %65 = tpu.matmul %63, %64, %cst_28 {dimension_numbers = #tpu.dot_dimension_numbers<[1], [0], [0], [1], [0, 0, 1, 1], [], []>} : vector<32x64xf32>, vector<64x128xbf16>, vector<32x128xf32> -> vector<32x128xf32>
    %66 = arith.addf %61, %65 : vector<32x128xf32>
    %c1 = arith.constant 1 : index
    %c0_29 = arith.constant 0 : index
    %67 = vector.load %arg3[%c1, %c0_29] : memref<16x128xf32, #tpu.memory_space<vmem>>, vector<1x128xf32>
    %68 = vector.broadcast %67 : vector<1x128xf32> to vector<32x128xf32>
    %69 = arith.addf %66, %68 : vector<32x128xf32>
    %cst_30 = arith.constant 0.000000e+00 : f32
    %70 = vector.broadcast %cst_30 : f32 to vector<32x128xf32>
    %71 = arith.maximumf %69, %70 : vector<32x128xf32>
    %72 = vector.shape_cast %71 : vector<32x128xf32> to vector<2x16x128xf32>
    %cst_31 = arith.constant dense<0.000000e+00> : vector<2x128xf32>
    %73 = vector.multi_reduction <add>, %72, %cst_31 [1] : vector<2x16x128xf32> to vector<2x128xf32>
    %c0_32 = arith.constant 0 : index
    %c0_33 = arith.constant 0 : index
    %74 = vector.load %arg1[%c0_32, %c0_33] : memref<2x8xf32, #tpu.memory_space<vmem>>, vector<2x8xf32>
    %c8 = arith.constant 8 : index
    %c0_34 = arith.constant 0 : index
    %75 = vector.load %arg3[%c8, %c0_34] : memref<16x128xf32, #tpu.memory_space<vmem>>, vector<8x128xf32>
    %cst_35 = arith.constant dense<0.000000e+00> : vector<2x128xf32>
    %76 = tpu.matmul %74, %75, %cst_35 {dimension_numbers = #tpu.dot_dimension_numbers<[1], [0], [0], [1], [0, 0, 1, 1], [], []>} : vector<2x8xf32>, vector<8x128xf32>, vector<2x128xf32> -> vector<2x128xf32>
    %c2 = arith.constant 2 : index
    %c0_36 = arith.constant 0 : index
    %77 = vector.load %arg3[%c2, %c0_36] : memref<16x128xf32, #tpu.memory_space<vmem>>, vector<1x128xf32>
    %78 = vector.broadcast %77 : vector<1x128xf32> to vector<2x128xf32>
    %79 = arith.addf %76, %78 : vector<2x128xf32>
    %c640 = arith.constant 640 : index
    %c0_37 = arith.constant 0 : index
    %80 = vector.load %arg2[%c640, %c0_37] : memref<1152x128xbf16, #tpu.memory_space<vmem>>, vector<128x128xbf16>
    %cst_38 = arith.constant dense<0.000000e+00> : vector<2x128xf32>
    %81 = tpu.matmul %30, %80, %cst_38 {dimension_numbers = #tpu.dot_dimension_numbers<[1], [0], [0], [1], [0, 0, 1, 1], [], []>} : vector<2x128xf32>, vector<128x128xbf16>, vector<2x128xf32> -> vector<2x128xf32>
    %c768 = arith.constant 768 : index
    %c0_39 = arith.constant 0 : index
    %82 = vector.load %arg2[%c768, %c0_39] : memref<1152x128xbf16, #tpu.memory_space<vmem>>, vector<128x128xbf16>
    %cst_40 = arith.constant dense<0.000000e+00> : vector<2x128xf32>
    %83 = tpu.matmul %73, %82, %cst_40 {dimension_numbers = #tpu.dot_dimension_numbers<[1], [0], [0], [1], [0, 0, 1, 1], [], []>} : vector<2x128xf32>, vector<128x128xbf16>, vector<2x128xf32> -> vector<2x128xf32>
    %84 = arith.addf %81, %83 : vector<2x128xf32>
    %c896 = arith.constant 896 : index
    %c0_41 = arith.constant 0 : index
    %85 = vector.load %arg2[%c896, %c0_41] : memref<1152x128xbf16, #tpu.memory_space<vmem>>, vector<128x128xbf16>
    %cst_42 = arith.constant dense<0.000000e+00> : vector<2x128xf32>
    %86 = tpu.matmul %79, %85, %cst_42 {dimension_numbers = #tpu.dot_dimension_numbers<[1], [0], [0], [1], [0, 0, 1, 1], [], []>} : vector<2x128xf32>, vector<128x128xbf16>, vector<2x128xf32> -> vector<2x128xf32>
    %87 = arith.addf %84, %86 : vector<2x128xf32>
    %c3 = arith.constant 3 : index
    %c0_43 = arith.constant 0 : index
    %88 = vector.load %arg3[%c3, %c0_43] : memref<16x128xf32, #tpu.memory_space<vmem>>, vector<1x128xf32>
    %89 = vector.broadcast %88 : vector<1x128xf32> to vector<2x128xf32>
    %90 = arith.addf %87, %89 : vector<2x128xf32>
    %cst_44 = arith.constant 0.000000e+00 : f32
    %91 = vector.broadcast %cst_44 : f32 to vector<2x128xf32>
    %92 = arith.maximumf %90, %91 : vector<2x128xf32>
    %c1024 = arith.constant 1024 : index
    %c0_45 = arith.constant 0 : index
    %93 = vector.load %arg2[%c1024, %c0_45] : memref<1152x128xbf16, #tpu.memory_space<vmem>>, vector<128x128xbf16>
    %cst_46 = arith.constant dense<0.000000e+00> : vector<2x128xf32>
    %94 = tpu.matmul %92, %93, %cst_46 {dimension_numbers = #tpu.dot_dimension_numbers<[1], [0], [0], [1], [0, 0, 1, 1], [], []>} : vector<2x128xf32>, vector<128x128xbf16>, vector<2x128xf32> -> vector<2x128xf32>
    %c4 = arith.constant 4 : index
    %c0_47 = arith.constant 0 : index
    %95 = vector.load %arg3[%c4, %c0_47] : memref<16x128xf32, #tpu.memory_space<vmem>>, vector<1x128xf32>
    %96 = vector.broadcast %95 : vector<1x128xf32> to vector<2x128xf32>
    %97 = arith.addf %94, %96 : vector<2x128xf32>
    %c0_48 = arith.constant 0 : index
    %c0_49 = arith.constant 0 : index
    %98 = vector.load %arg4[%c0_48, %c0_49] : memref<2x128xf32, #tpu.memory_space<vmem>>, vector<2x128xf32>
    tpu.vector_store %arg4[%c0_48, %c0_49], %97 {strides = array<i32>} : memref<2x128xf32, #tpu.memory_space<vmem>>, vector<2x128xf32>,
    return
  }
}

</mosaic_0001>

<llo_original>
// kernel: three_inputs_net.1
$region0: #{three_inputs_net.1}
  #allocation0 [shape = 'u32[]', space=smem, size = 0x4, offset = 0x4, fixed_abs, tag = 'smem constant byte address 0x4 - core index']
  #allocation1 [shape = 'u32[72,128]{1,0:T(1,128)}', space=vmem, size = 0x9000, scoped, tag = 'internal scratch']
  %s0 = inlined_call_operand.vmem [shape: s32[64,1], index: 0, kind: input, shape index: {}]
  %s1 = inlined_call_operand.vmem [shape: f32[2,8], index: 1, kind: input, shape index: {}]
  %s2 = inlined_call_operand.hbm [shape: bf16[1152,128], index: 2, kind: input, shape index: {}]
  %s3 = inlined_call_operand.vmem [shape: f32[16,128], index: 3, kind: input, shape index: {}]
  %s4 = inlined_call_operand.vmem [shape: f32[2,128], index: 4, kind: output, shape index: {}]
  %s5 = sld [smem:[#allocation0]]
  $region30: #{three_inputs_net.1} parent=0
    _
  %s7 = ssub.s32 1, %s5
  %s8 = scalar_select 0, %s7, %s5
  $region1: #{three_inputs_net.1} parent=0
    #allocation2 [shape = 'u8[294912]{0}', space=vmem, size = 0x48000, scoped, tag = 'input window, operand 2, single buffered']
    #allocation3 [shape = 's32[1]{0}', space=sflag, size = 0x4, scoped, tag = 'scoped memory for three_inputs_net.1']
    %9 = vsyncpa [#allocation3], 0
    // Predicated region
    $region2: #{three_inputs_net.1} parent=1 // pred_check
      _
    $region3: #{three_inputs_net.1} parent=1 // pred_check_branch
      %11 = sbr.rel (0) target = $region5
    $region4: #{three_inputs_net.1} parent=1 // pred_region
      _
    $region5: #{three_inputs_net.1} parent=1 // pred_fallthru
      _
    // Predicated region
    $region6: #{three_inputs_net.1} parent=1 // pred_check
      _
    $region7: #{three_inputs_net.1} parent=1 // pred_check_branch
      %13 = sbr.rel (0) target = $region9
    $region8: #{three_inputs_net.1} parent=1 // pred_region
      _
    $region9: #{three_inputs_net.1} parent=1 // pred_fallthru
      _
    // Predicated region
    $region10: #{three_inputs_net.1} parent=1 // pred_check
      _
    $region11: #{three_inputs_net.1} parent=1 // pred_check_branch
      %15 = sbr.rel (0) target = $region13
    $region12: #{three_inputs_net.1} parent=1 // pred_region
      %17 = vsyncadd [#allocation3], 0
      %s18 = sshll.u32 %s2, 4
      %s19 = int_to_ptr.hbm [resolvable:$true] %s18
      %s20 = sshll.u32 [#allocation2], 4
      %s21 = int_to_ptr.vmem [resolvable:$true] %s20
      %26 = dma.hbm_to_vmem [thread:$0]  %s19, 9216, %s21, [#allocation3], 64, 64, 4
    $region13: #{three_inputs_net.1} parent=1 // pred_fallthru
      _
    // Predicated region
    $region14: #{three_inputs_net.1} parent=1 // pred_check
      _
    $region15: #{three_inputs_net.1} parent=1 // pred_check_branch
      %28 = sbr.rel (0) target = $region17
    $region16: #{three_inputs_net.1} parent=1 // pred_region
      _
    $region17: #{three_inputs_net.1} parent=1 // pred_fallthru
      _
    // Predicated region
    $region18: #{three_inputs_net.1} parent=1 // pred_check
      _
    $region19: #{three_inputs_net.1} parent=1 // pred_check_branch
      %30 = sbr.rel (0) target = $region21
    $region20: #{three_inputs_net.1} parent=1 // pred_region
      %32 = dma.done [#allocation3], 9216
    $region21: #{three_inputs_net.1} parent=1 // pred_fallthru
      _
    %v34 = vld [vmem:[%s0] sm:$0xff]
    %v35 = vld [vmem:[%s0 + $0x8] sm:$0xff]
    %v36 = vld [vmem:[%s0 + $0x10] sm:$0xff]
    %v37 = vld [vmem:[%s0 + $0x18] sm:$0xff]
    %v38 = vld [vmem:[%s0 + $0x20] sm:$0xff]
    %v39 = vld [vmem:[%s0 + $0x28] sm:$0xff]
    %v40 = vld [vmem:[%s0 + $0x30] sm:$0xff]
    %v41 = vld [vmem:[%s0 + $0x38] sm:$0xff]
    %v42 = vlaneseq
    %v43 = vand.u32 %v42, 127
    %44 = vset.pattern.permute.xlu0 0
    %45 = vperm.xlu0 %44, %v34
    %v46 = vpop.permute.xlu0 %45
    %47 = vset.pattern.permute.xlu0 0
    %48 = vperm.xlu0 %47, %v35
    %v49 = vpop.permute.xlu0 %48
    %50 = vset.pattern.permute.xlu0 0
    %51 = vperm.xlu0 %50, %v36
    %v52 = vpop.permute.xlu0 %51
    %53 = vset.pattern.permute.xlu0 0
    %54 = vperm.xlu0 %53, %v37
    %v55 = vpop.permute.xlu0 %54
    %56 = vset.pattern.permute.xlu0 0
    %57 = vperm.xlu0 %56, %v38
    %v58 = vpop.permute.xlu0 %57
    %59 = vset.pattern.permute.xlu0 0
    %60 = vperm.xlu0 %59, %v39
    %v61 = vpop.permute.xlu0 %60
    %62 = vset.pattern.permute.xlu0 0
    %63 = vperm.xlu0 %62, %v40
    %v64 = vpop.permute.xlu0 %63
    %65 = vset.pattern.permute.xlu0 0
    %66 = vperm.xlu0 %65, %v41
    %v67 = vpop.permute.xlu0 %66
    %vm68 = vcmp.eq.s32.totalorder %v46, %v43
    %vm69 = vcmp.eq.s32.totalorder %v49, %v43
    %vm70 = vcmp.eq.s32.totalorder %v52, %v43
    %vm71 = vcmp.eq.s32.totalorder %v55, %v43
    %vm72 = vcmp.eq.s32.totalorder %v58, %v43
    %vm73 = vcmp.eq.s32.totalorder %v61, %v43
    %vm74 = vcmp.eq.s32.totalorder %v64, %v43
    %vm75 = vcmp.eq.s32.totalorder %v67, %v43
    %v76 = vsel %vm68, 1.0, 0.0
    %v77 = vsel %vm69, 1.0, 0.0
    %v78 = vsel %vm70, 1.0, 0.0
    %v79 = vsel %vm71, 1.0, 0.0
    %v80 = vsel %vm72, 1.0, 0.0
    %v81 = vsel %vm73, 1.0, 0.0
    %v82 = vsel %vm74, 1.0, 0.0
    %v83 = vsel %vm75, 1.0, 0.0
    %v84 = vld [vmem:[#allocation2] sm:$0xf]
    %v85 = vld [vmem:[#allocation2 + $0x4] sm:$0xf]
    %v86 = vld [vmem:[#allocation2 + $0x8] sm:$0xf]
    %v87 = vld [vmem:[#allocation2 + $0xc] sm:$0xf]
    %v88 = vld [vmem:[#allocation2 + $0x10] sm:$0xf]
    %v89 = vld [vmem:[#allocation2 + $0x14] sm:$0xf]
    %v90 = vld [vmem:[#allocation2 + $0x18] sm:$0xf]
    %v91 = vld [vmem:[#allocation2 + $0x1c] sm:$0xf]
    %vm96 = vcmask 1046528
    %v97 = vrot.slane %v76, 1
    %v98 = vrot.slane %v77, 1
    %v99 = vsel %vm96, %v97, %v98
    %v100 = vrot.slane %v80, 1
    %v101 = vrot.slane %v81, 1
    %v102 = vsel %vm96, %v100, %v101
    %v103 = vld [vmem:[#allocation2 + $0x20] sm:$0xf]
    %v104 = vld [vmem:[#allocation2 + $0x24] sm:$0xf]
    %v105 = vld [vmem:[#allocation2 + $0x28] sm:$0xf]
    %v106 = vld [vmem:[#allocation2 + $0x2c] sm:$0xf]
    %v107 = vld [vmem:[#allocation2 + $0x30] sm:$0xf]
    %v108 = vld [vmem:[#allocation2 + $0x34] sm:$0xf]
    %v109 = vld [vmem:[#allocation2 + $0x38] sm:$0xf]
    %v110 = vld [vmem:[#allocation2 + $0x3c] sm:$0xf]
    %v119 = vunpack.c.l.b16 %v103
    %v120 = vunpack.c.l.b16 %v104
    %v121 = vunpack.c.l.b16 %v105
    %v122 = vunpack.c.l.b16 %v106
    %v123 = vunpack.c.l.b16 %v107
    %v124 = vunpack.c.l.b16 %v108
    %v125 = vunpack.c.l.b16 %v109
    %v126 = vunpack.c.l.b16 %v110
    %v127 = vpack.c.b16 %v120, %v119
    %v128 = vpack.c.b16 %v122, %v121
    %v129 = vpack.c.b16 %v124, %v123
    %v130 = vpack.c.b16 %v126, %v125
    %vm135 = vcmask 523264
    %v136 = vsel %vm135, %v99, 0
    %v138 = vsel %vm135, %v102, 0
    %140 = vmatpush.bf16.msra.mxu0 0
    %141 = vmatpush.bf16.msra.mxu0 0
    %142 = vmatpush.bf16.msra.mxu0 0
    %143 = vmatpush.bf16.msra.mxu0 0
    %144 = vmatpush.bf16.msra.mxu0 %v130
    %145 = vmatpush.bf16.msra.mxu0 %v129
    %146 = vmatpush.bf16.msra.mxu0 %v128
    %147 = vmatpush.bf16.msra.mxu0 %v127
    %148 = vmatmul.f32.gmra.mxu0 %v136
    %v149 = vpop.f32.mrf.mxu0
    %v150 = vadd.f32 0.0, %v149
    %151 = vmatmul.f32.gmra.mxu0 %v138
    %v152 = vpop.f32.mrf.mxu0
    %v153 = vadd.f32 0.0, %v152
    %154 = vdwg.mxu0
    %v163 = vunpack.c.l.b16 %v84
    %v164 = vunpack.c.l.b16 %v85
    %v165 = vunpack.c.l.b16 %v86
    %v166 = vunpack.c.l.b16 %v87
    %v167 = vunpack.c.l.b16 %v88
    %v168 = vunpack.c.l.b16 %v89
    %v169 = vunpack.c.l.b16 %v90
    %v170 = vunpack.c.l.b16 %v91
    %v171 = vpack.c.b16 %v164, %v163
    %v172 = vpack.c.b16 %v166, %v165
    %v173 = vpack.c.b16 %v168, %v167
    %v174 = vpack.c.b16 %v170, %v169
    %v179 = vsel %vm135, %v76, 0
    %v181 = vsel %vm135, %v80, 0
    %183 = vmatpush.bf16.msra.mxu0 0
    %184 = vmatpush.bf16.msra.mxu0 0
    %185 = vmatpush.bf16.msra.mxu0 0
    %186 = vmatpush.bf16.msra.mxu0 0
    %187 = vmatpush.bf16.msra.mxu0 %v174
    %188 = vmatpush.bf16.msra.mxu0 %v173
    %189 = vmatpush.bf16.msra.mxu0 %v172
    %190 = vmatpush.bf16.msra.mxu0 %v171
    %191 = vmatmul.f32.gmra.mxu0 %v179
    %v192 = vpop.f32.mrf.mxu0
    %v193 = vadd.f32 %v150, %v192
    %194 = vmatmul.f32.gmra.mxu0 %v181
    %v195 = vpop.f32.mrf.mxu0
    %v196 = vadd.f32 %v153, %v195
    %197 = vdwg.mxu0
    %vm198 = vcmask 1045504
    %v199 = vrot.slane %v76, 2
    %v200 = vrot.slane %v77, 2
    %v201 = vsel %vm198, %v199, %v200
    %v202 = vrot.slane %v80, 2
    %v203 = vrot.slane %v81, 2
    %v204 = vsel %vm198, %v202, %v203
    %v205 = vld [vmem:[#allocation2 + $0x40] sm:$0xf]
    %v206 = vld [vmem:[#allocation2 + $0x44] sm:$0xf]
    %v207 = vld [vmem:[#allocation2 + $0x48] sm:$0xf]
    %v208 = vld [vmem:[#allocation2 + $0x4c] sm:$0xf]
    %v209 = vld [vmem:[#allocation2 + $0x50] sm:$0xf]
    %v210 = vld [vmem:[#allocation2 + $0x54] sm:$0xf]
    %v211 = vld [vmem:[#allocation2 + $0x58] sm:$0xf]
    %v212 = vld [vmem:[#allocation2 + $0x5c] sm:$0xf]
    %v221 = vunpack.c.l.b16 %v205
    %v222 = vunpack.c.l.b16 %v206
    %v223 = vunpack.c.l.b16 %v207
    %v224 = vunpack.c.l.b16 %v208
    %v225 = vunpack.c.l.b16 %v209
    %v226 = vunpack.c.l.b16 %v210
    %v227 = vunpack.c.l.b16 %v211
    %v228 = vunpack.c.l.b16 %v212
    %v229 = vpack.c.b16 %v222, %v221
    %v230 = vpack.c.b16 %v224, %v223
    %v231 = vpack.c.b16 %v226, %v225
    %v232 = vpack.c.b16 %v228, %v227
    %v237 = vsel %vm135, %v201, 0
    %v239 = vsel %vm135, %v204, 0
    %241 = vmatpush.bf16.msra.mxu0 0
    %242 = vmatpush.bf16.msra.mxu0 0
    %243 = vmatpush.bf16.msra.mxu0 0
    %244 = vmatpush.bf16.msra.mxu0 0
    %245 = vmatpush.bf16.msra.mxu0 %v232
    %246 = vmatpush.bf16.msra.mxu0 %v231
    %247 = vmatpush.bf16.msra.mxu0 %v230
    %248 = vmatpush.bf16.msra.mxu0 %v229
    %249 = vmatmul.f32.gmra.mxu0 %v237
    %v250 = vpop.f32.mrf.mxu0
    %v251 = vadd.f32 0.0, %v250
    %252 = vmatmul.f32.gmra.mxu0 %v239
    %v253 = vpop.f32.mrf.mxu0
    %v254 = vadd.f32 0.0, %v253
    %255 = vdwg.mxu0
    %v256 = vadd.f32 %v193, %v251
    %v257 = vadd.f32 %v196, %v254
    %v258 = vld [vmem:[%s3] sm:$0x1]
    %v259 = vperm.slane %v258, 0
    %v260 = vadd.f32 %v256, %v259
    %v261 = vadd.f32 %v257, %v259
    %v262 = vmax.f32 %v260, 0.0
    %v263 = vmax.f32 %v261, 0.0
    %v264 = vrot.slane %v262, 4
    %v265 = vadd.f32 %v262, %v264
    %v266 = vrot.slane %v265, 2
    %v267 = vadd.f32 %v265, %v266
    %v268 = vrot.slane %v267, 1
    %v269 = vadd.f32 %v267, %v268
    %v270 = vrot.slane %v263, 4
    %v271 = vadd.f32 %v263, %v270
    %v272 = vrot.slane %v271, 2
    %v273 = vadd.f32 %v271, %v272
    %v274 = vrot.slane %v273, 1
    %v275 = vadd.f32 %v273, %v274
    %v280 = vrot.slane %v78, 2
    %v281 = vsel %vm198, %v200, %v280
    %v282 = vrot.slane %v79, 2
    %v283 = vsel %vm198, %v280, %v282
    %v284 = vrot.slane %v82, 2
    %v285 = vsel %vm198, %v203, %v284
    %v286 = vrot.slane %v83, 2
    %v287 = vsel %vm198, %v284, %v286
    %v288 = vld [vmem:[#allocation2 + $0x60] sm:$0xf]
    %v289 = vld [vmem:[#allocation2 + $0x64] sm:$0xf]
    %v290 = vld [vmem:[#allocation2 + $0x68] sm:$0xf]
    %v291 = vld [vmem:[#allocation2 + $0x6c] sm:$0xf]
    %v292 = vld [vmem:[#allocation2 + $0x70] sm:$0xf]
    %v293 = vld [vmem:[#allocation2 + $0x74] sm:$0xf]
    %v294 = vld [vmem:[#allocation2 + $0x78] sm:$0xf]
    %v295 = vld [vmem:[#allocation2 + $0x7c] sm:$0xf]
    %vm296 = vcmask 1044480
    %v297 = vrot.slane %v77, 3
    %v298 = vrot.slane %v78, 3
    %v299 = vsel %vm296, %v297, %v298
    %v300 = vrot.slane %v79, 3
    %v301 = vsel %vm296, %v298, %v300
    %v302 = vrot.slane %v81, 3
    %v303 = vrot.slane %v82, 3
    %v304 = vsel %vm296, %v302, %v303
    %v305 = vrot.slane %v83, 3
    %v306 = vsel %vm296, %v303, %v305
    %v307 = vld [vmem:[#allocation2 + $0x80] sm:$0xf]
    %v308 = vld [vmem:[#allocation2 + $0x84] sm:$0xf]
    %v309 = vld [vmem:[#allocation2 + $0x88] sm:$0xf]
    %v310 = vld [vmem:[#allocation2 + $0x8c] sm:$0xf]
    %v311 = vld [vmem:[#allocation2 + $0x90] sm:$0xf]
    %v312 = vld [vmem:[#allocation2 + $0x94] sm:$0xf]
    %v313 = vld [vmem:[#allocation2 + $0x98] sm:$0xf]
    %v314 = vld [vmem:[#allocation2 + $0x9c] sm:$0xf]
    %v323 = vunpack.c.l.b16 %v307
    %v324 = vunpack.c.l.b16 %v308
    %v325 = vunpack.c.l.b16 %v309
    %v326 = vunpack.c.l.b16 %v310
    %v327 = vunpack.c.l.b16 %v311
    %v328 = vunpack.c.l.b16 %v312
    %v329 = vunpack.c.l.b16 %v313
    %v330 = vunpack.c.l.b16 %v314
    %v331 = vpack.c.b16 %v324, %v323
    %v332 = vpack.c.b16 %v326, %v325
    %v333 = vpack.c.b16 %v328, %v327
    %v334 = vpack.c.b16 %v330, %v329
    %v339 = vsel %vm135, %v299, 0
    %v341 = vsel %vm135, %v301, 0
    %v343 = vsel %vm135, %v304, 0
    %v345 = vsel %vm135, %v306, 0
    %347 = vmatpush.bf16.msra.mxu0 0
    %348 = vmatpush.bf16.msra.mxu0 0
    %349 = vmatpush.bf16.msra.mxu0 0
    %350 = vmatpush.bf16.msra.mxu0 0
    %351 = vmatpush.bf16.msra.mxu0 %v334
    %352 = vmatpush.bf16.msra.mxu0 %v333
    %353 = vmatpush.bf16.msra.mxu0 %v332
    %354 = vmatpush.bf16.msra.mxu0 %v331
    %355 = vmatmul.f32.gmra.mxu0 %v339
    %v356 = vpop.f32.mrf.mxu0
    %v357 = vadd.f32 0.0, %v356
    %358 = vmatmul.f32.gmra.mxu0 %v341
    %v359 = vpop.f32.mrf.mxu0
    %v360 = vadd.f32 0.0, %v359
    %361 = vmatmul.f32.gmra.mxu0 %v343
    %v362 = vpop.f32.mrf.mxu0
    %v363 = vadd.f32 0.0, %v362
    %364 = vmatmul.f32.gmra.mxu0 %v345
    %v365 = vpop.f32.mrf.mxu0
    %v366 = vadd.f32 0.0, %v365
    %367 = vdwg.mxu0
    %v376 = vunpack.c.l.b16 %v288
    %v377 = vunpack.c.l.b16 %v289
    %v378 = vunpack.c.l.b16 %v290
    %v379 = vunpack.c.l.b16 %v291
    %v380 = vunpack.c.l.b16 %v292
    %v381 = vunpack.c.l.b16 %v293
    %v382 = vunpack.c.l.b16 %v294
    %v383 = vunpack.c.l.b16 %v295
    %v384 = vpack.c.b16 %v377, %v376
    %v385 = vpack.c.b16 %v379, %v378
    %v386 = vpack.c.b16 %v381, %v380
    %v387 = vpack.c.b16 %v383, %v382
    %v392 = vsel %vm135, %v281, 0
    %v394 = vsel %vm135, %v283, 0
    %v396 = vsel %vm135, %v285, 0
    %v398 = vsel %vm135, %v287, 0
    %400 = vmatpush.bf16.msra.mxu0 0
    %401 = vmatpush.bf16.msra.mxu0 0
    %402 = vmatpush.bf16.msra.mxu0 0
    %403 = vmatpush.bf16.msra.mxu0 0
    %404 = vmatpush.bf16.msra.mxu0 %v387
    %405 = vmatpush.bf16.msra.mxu0 %v386
    %406 = vmatpush.bf16.msra.mxu0 %v385
    %407 = vmatpush.bf16.msra.mxu0 %v384
    %408 = vmatmul.f32.gmra.mxu0 %v392
    %v409 = vpop.f32.mrf.mxu0
    %v410 = vadd.f32 %v357, %v409
    %411 = vmatmul.f32.gmra.mxu0 %v394
    %v412 = vpop.f32.mrf.mxu0
    %v413 = vadd.f32 %v360, %v412
    %414 = vmatmul.f32.gmra.mxu0 %v396
    %v415 = vpop.f32.mrf.mxu0
    %v416 = vadd.f32 %v363, %v415
    %417 = vmatmul.f32.gmra.mxu0 %v398
    %v418 = vpop.f32.mrf.mxu0
    %v419 = vadd.f32 %v366, %v418
    %420 = vdwg.mxu0
    %vm421 = vcmask 1043456
    %v422 = vrot.slane %v77, 4
    %v423 = vrot.slane %v78, 4
    %v424 = vsel %vm421, %v422, %v423
    %v425 = vrot.slane %v79, 4
    %v426 = vsel %vm421, %v423, %v425
    %v427 = vrot.slane %v81, 4
    %v428 = vrot.slane %v82, 4
    %v429 = vsel %vm421, %v427, %v428
    %v430 = vrot.slane %v83, 4
    %v431 = vsel %vm421, %v428, %v430
    %v432 = vld [vmem:[#allocation2 + $0xa0] sm:$0xf]
    %v433 = vld [vmem:[#allocation2 + $0xa4] sm:$0xf]
    %v434 = vld [vmem:[#allocation2 + $0xa8] sm:$0xf]
    %v435 = vld [vmem:[#allocation2 + $0xac] sm:$0xf]
    %v436 = vld [vmem:[#allocation2 + $0xb0] sm:$0xf]
    %v437 = vld [vmem:[#allocation2 + $0xb4] sm:$0xf]
    %v438 = vld [vmem:[#allocation2 + $0xb8] sm:$0xf]
    %v439 = vld [vmem:[#allocation2 + $0xbc] sm:$0xf]
    %v448 = vunpack.c.l.b16 %v432
    %v449 = vunpack.c.l.b16 %v433
    %v450 = vunpack.c.l.b16 %v434
    %v451 = vunpack.c.l.b16 %v435
    %v452 = vunpack.c.l.b16 %v436
    %v453 = vunpack.c.l.b16 %v437
    %v454 = vunpack.c.l.b16 %v438
    %v455 = vunpack.c.l.b16 %v439
    %v456 = vpack.c.b16 %v449, %v448
    %v457 = vpack.c.b16 %v451, %v450
    %v458 = vpack.c.b16 %v453, %v452
    %v459 = vpack.c.b16 %v455, %v454
    %v464 = vsel %vm135, %v424, 0
    %v466 = vsel %vm135, %v426, 0
    %v468 = vsel %vm135, %v429, 0
    %v470 = vsel %vm135, %v431, 0
    %472 = vmatpush.bf16.msra.mxu0 0
    %473 = vmatpush.bf16.msra.mxu0 0
    %474 = vmatpush.bf16.msra.mxu0 0
    %475 = vmatpush.bf16.msra.mxu0 0
    %476 = vmatpush.bf16.msra.mxu0 %v459
    %477 = vmatpush.bf16.msra.mxu0 %v458
    %478 = vmatpush.bf16.msra.mxu0 %v457
    %479 = vmatpush.bf16.msra.mxu0 %v456
    %480 = vmatmul.f32.gmra.mxu0 %v464
    %v481 = vpop.f32.mrf.mxu0
    %v482 = vadd.f32 0.0, %v481
    %483 = vmatmul.f32.gmra.mxu0 %v466
    %v484 = vpop.f32.mrf.mxu0
    %v485 = vadd.f32 0.0, %v484
    %486 = vmatmul.f32.gmra.mxu0 %v468
    %v487 = vpop.f32.mrf.mxu0
    %v488 = vadd.f32 0.0, %v487
    %489 = vmatmul.f32.gmra.mxu0 %v470
    %v490 = vpop.f32.mrf.mxu0
    %v491 = vadd.f32 0.0, %v490
    %492 = vdwg.mxu0
    %v493 = vadd.f32 %v410, %v482
    %v494 = vadd.f32 %v413, %v485
    %v495 = vadd.f32 %v416, %v488
    %v496 = vadd.f32 %v419, %v491
    %vm497 = vcmask 1042432
    %v498 = vrot.slane %v77, 5
    %v499 = vrot.slane %v78, 5
    %v500 = vsel %vm497, %v498, %v499
    %v501 = vrot.slane %v79, 5
    %v502 = vsel %vm497, %v499, %v501
    %v503 = vrot.slane %v81, 5
    %v504 = vrot.slane %v82, 5
    %v505 = vsel %vm497, %v503, %v504
    %v506 = vrot.slane %v83, 5
    %v507 = vsel %vm497, %v504, %v506
    %v508 = vld [vmem:[#allocation2 + $0xc0] sm:$0xf]
    %v509 = vld [vmem:[#allocation2 + $0xc4] sm:$0xf]
    %v510 = vld [vmem:[#allocation2 + $0xc8] sm:$0xf]
    %v511 = vld [vmem:[#allocation2 + $0xcc] sm:$0xf]
    %v512 = vld [vmem:[#allocation2 + $0xd0] sm:$0xf]
    %v513 = vld [vmem:[#allocation2 + $0xd4] sm:$0xf]
    %v514 = vld [vmem:[#allocation2 + $0xd8] sm:$0xf]
    %v515 = vld [vmem:[#allocation2 + $0xdc] sm:$0xf]
    %v524 = vunpack.c.l.b16 %v508
    %v525 = vunpack.c.l.b16 %v509
    %v526 = vunpack.c.l.b16 %v510
    %v527 = vunpack.c.l.b16 %v511
    %v528 = vunpack.c.l.b16 %v512
    %v529 = vunpack.c.l.b16 %v513
    %v530 = vunpack.c.l.b16 %v514
    %v531 = vunpack.c.l.b16 %v515
    %v532 = vpack.c.b16 %v525, %v524
    %v533 = vpack.c.b16 %v527, %v526
    %v534 = vpack.c.b16 %v529, %v528
    %v535 = vpack.c.b16 %v531, %v530
    %v540 = vsel %vm135, %v500, 0
    %v542 = vsel %vm135, %v502, 0
    %v544 = vsel %vm135, %v505, 0
    %v546 = vsel %vm135, %v507, 0
    %548 = vmatpush.bf16.msra.mxu0 0
    %549 = vmatpush.bf16.msra.mxu0 0
    %550 = vmatpush.bf16.msra.mxu0 0
    %551 = vmatpush.bf16.msra.mxu0 0
    %552 = vmatpush.bf16.msra.mxu0 %v535
    %553 = vmatpush.bf16.msra.mxu0 %v534
    %554 = vmatpush.bf16.msra.mxu0 %v533
    %555 = vmatpush.bf16.msra.mxu0 %v532
    %556 = vmatmul.f32.gmra.mxu0 %v540
    %v557 = vpop.f32.mrf.mxu0
    %v558 = vadd.f32 0.0, %v557
    %559 = vmatmul.f32.gmra.mxu0 %v542
    %v560 = vpop.f32.mrf.mxu0
    %v561 = vadd.f32 0.0, %v560
    %562 = vmatmul.f32.gmra.mxu0 %v544
    %v563 = vpop.f32.mrf.mxu0
    %v564 = vadd.f32 0.0, %v563
    %565 = vmatmul.f32.gmra.mxu0 %v546
    %v566 = vpop.f32.mrf.mxu0
    %v567 = vadd.f32 0.0, %v566
    %568 = vdwg.mxu0
    %v569 = vadd.f32 %v493, %v558
    %v570 = vadd.f32 %v494, %v561
    %v571 = vadd.f32 %v495, %v564
    %v572 = vadd.f32 %v496, %v567
    %vm573 = vcmask 1041408
    %v574 = vrot.slane %v77, 6
    %v575 = vrot.slane %v78, 6
    %v576 = vsel %vm573, %v574, %v575
    %v577 = vrot.slane %v79, 6
    %v578 = vsel %vm573, %v575, %v577
    %v579 = vrot.slane %v81, 6
    %v580 = vrot.slane %v82, 6
    %v581 = vsel %vm573, %v579, %v580
    %v582 = vrot.slane %v83, 6
    %v583 = vsel %vm573, %v580, %v582
    %v584 = vld [vmem:[#allocation2 + $0xe0] sm:$0xf]
    %v585 = vld [vmem:[#allocation2 + $0xe4] sm:$0xf]
    %v586 = vld [vmem:[#allocation2 + $0xe8] sm:$0xf]
    %v587 = vld [vmem:[#allocation2 + $0xec] sm:$0xf]
    %v588 = vld [vmem:[#allocation2 + $0xf0] sm:$0xf]
    %v589 = vld [vmem:[#allocation2 + $0xf4] sm:$0xf]
    %v590 = vld [vmem:[#allocation2 + $0xf8] sm:$0xf]
    %v591 = vld [vmem:[#allocation2 + $0xfc] sm:$0xf]
    %v600 = vunpack.c.l.b16 %v584
    %v601 = vunpack.c.l.b16 %v585
    %v602 = vunpack.c.l.b16 %v586
    %v603 = vunpack.c.l.b16 %v587
    %v604 = vunpack.c.l.b16 %v588
    %v605 = vunpack.c.l.b16 %v589
    %v606 = vunpack.c.l.b16 %v590
    %v607 = vunpack.c.l.b16 %v591
    %v608 = vpack.c.b16 %v601, %v600
    %v609 = vpack.c.b16 %v603, %v602
    %v610 = vpack.c.b16 %v605, %v604
    %v611 = vpack.c.b16 %v607, %v606
    %v616 = vsel %vm135, %v576, 0
    %v618 = vsel %vm135, %v578, 0
    %v620 = vsel %vm135, %v581, 0
    %v622 = vsel %vm135, %v583, 0
    %624 = vmatpush.bf16.msra.mxu0 0
    %625 = vmatpush.bf16.msra.mxu0 0
    %626 = vmatpush.bf16.msra.mxu0 0
    %627 = vmatpush.bf16.msra.mxu0 0
    %628 = vmatpush.bf16.msra.mxu0 %v611
    %629 = vmatpush.bf16.msra.mxu0 %v610
    %630 = vmatpush.bf16.msra.mxu0 %v609
    %631 = vmatpush.bf16.msra.mxu0 %v608
    %632 = vmatmul.f32.gmra.mxu0 %v616
    %v633 = vpop.f32.mrf.mxu0
    %v634 = vadd.f32 0.0, %v633
    %635 = vmatmul.f32.gmra.mxu0 %v618
    %v636 = vpop.f32.mrf.mxu0
    %v637 = vadd.f32 0.0, %v636
    %638 = vmatmul.f32.gmra.mxu0 %v620
    %v639 = vpop.f32.mrf.mxu0
    %v640 = vadd.f32 0.0, %v639
    %641 = vmatmul.f32.gmra.mxu0 %v622
    %v642 = vpop.f32.mrf.mxu0
    %v643 = vadd.f32 0.0, %v642
    %644 = vdwg.mxu0
    %v645 = vadd.f32 %v569, %v634
    %v646 = vadd.f32 %v570, %v637
    %v647 = vadd.f32 %v571, %v640
    %v648 = vadd.f32 %v572, %v643
    %vm649 = vcmask 1040384
    %v650 = vrot.slane %v77, 7
    %v651 = vrot.slane %v78, 7
    %v652 = vsel %vm649, %v650, %v651
    %v653 = vrot.slane %v79, 7
    %v654 = vsel %vm649, %v651, %v653
    %v655 = vrot.slane %v81, 7
    %v656 = vrot.slane %v82, 7
    %v657 = vsel %vm649, %v655, %v656
    %v658 = vrot.slane %v83, 7
    %v659 = vsel %vm649, %v656, %v658
    %v660 = vld [vmem:[#allocation2 + $0x100] sm:$0xf]
    %v661 = vld [vmem:[#allocation2 + $0x104] sm:$0xf]
    %v662 = vld [vmem:[#allocation2 + $0x108] sm:$0xf]
    %v663 = vld [vmem:[#allocation2 + $0x10c] sm:$0xf]
    %v664 = vld [vmem:[#allocation2 + $0x110] sm:$0xf]
    %v665 = vld [vmem:[#allocation2 + $0x114] sm:$0xf]
    %v666 = vld [vmem:[#allocation2 + $0x118] sm:$0xf]
    %v667 = vld [vmem:[#allocation2 + $0x11c] sm:$0xf]
    %v676 = vunpack.c.l.b16 %v660
    %v677 = vunpack.c.l.b16 %v661
    %v678 = vunpack.c.l.b16 %v662
    %v679 = vunpack.c.l.b16 %v663
    %v680 = vunpack.c.l.b16 %v664
    %v681 = vunpack.c.l.b16 %v665
    %v682 = vunpack.c.l.b16 %v666
    %v683 = vunpack.c.l.b16 %v667
    %v684 = vpack.c.b16 %v677, %v676
    %v685 = vpack.c.b16 %v679, %v678
    %v686 = vpack.c.b16 %v681, %v680
    %v687 = vpack.c.b16 %v683, %v682
    %v692 = vsel %vm135, %v652, 0
    %v694 = vsel %vm135, %v654, 0
    %v696 = vsel %vm135, %v657, 0
    %v698 = vsel %vm135, %v659, 0
    %700 = vmatpush.bf16.msra.mxu0 0
    %701 = vmatpush.bf16.msra.mxu0 0
    %702 = vmatpush.bf16.msra.mxu0 0
    %703 = vmatpush.bf16.msra.mxu0 0
    %704 = vmatpush.bf16.msra.mxu0 %v687
    %705 = vmatpush.bf16.msra.mxu0 %v686
    %706 = vmatpush.bf16.msra.mxu0 %v685
    %707 = vmatpush.bf16.msra.mxu0 %v684
    %708 = vmatmul.f32.gmra.mxu0 %v692
    %v709 = vpop.f32.mrf.mxu0
    %v710 = vadd.f32 0.0, %v709
    %711 = vmatmul.f32.gmra.mxu0 %v694
    %v712 = vpop.f32.mrf.mxu0
    %v713 = vadd.f32 0.0, %v712
    %714 = vmatmul.f32.gmra.mxu0 %v696
    %v715 = vpop.f32.mrf.mxu0
    %v716 = vadd.f32 0.0, %v715
    %717 = vmatmul.f32.gmra.mxu0 %v698
    %v718 = vpop.f32.mrf.mxu0
    %v719 = vadd.f32 0.0, %v718
    %720 = vdwg.mxu0
    %v721 = vadd.f32 %v645, %v710
    %v722 = vadd.f32 %v646, %v713
    %v723 = vadd.f32 %v647, %v716
    %v724 = vadd.f32 %v648, %v719
    %v725 = vld [vmem:[#allocation2 + $0x120] sm:$0xf]
    %v726 = vld [vmem:[#allocation2 + $0x124] sm:$0xf]
    %v727 = vld [vmem:[#allocation2 + $0x128] sm:$0xf]
    %v728 = vld [vmem:[#allocation2 + $0x12c] sm:$0xf]
    %v729 = vld [vmem:[#allocation2 + $0x130] sm:$0xf]
    %v730 = vld [vmem:[#allocation2 + $0x134] sm:$0xf]
    %v731 = vld [vmem:[#allocation2 + $0x138] sm:$0xf]
    %v732 = vld [vmem:[#allocation2 + $0x13c] sm:$0xf]
    %v741 = vunpack.c.l.b16 %v725
    %v742 = vunpack.c.l.b16 %v726
    %v743 = vunpack.c.l.b16 %v727
    %v744 = vunpack.c.l.b16 %v728
    %v745 = vunpack.c.l.b16 %v729
    %v746 = vunpack.c.l.b16 %v730
    %v747 = vunpack.c.l.b16 %v731
    %v748 = vunpack.c.l.b16 %v732
    %v749 = vpack.c.b16 %v742, %v741
    %v750 = vpack.c.b16 %v744, %v743
    %v751 = vpack.c.b16 %v746, %v745
    %v752 = vpack.c.b16 %v748, %v747
    %v757 = vsel %vm135, %v78, 0
    %v759 = vsel %vm135, %v79, 0
    %v761 = vsel %vm135, %v82, 0
    %v763 = vsel %vm135, %v83, 0
    %765 = vmatpush.bf16.msra.mxu0 0
    %766 = vmatpush.bf16.msra.mxu0 0
    %767 = vmatpush.bf16.msra.mxu0 0
    %768 = vmatpush.bf16.msra.mxu0 0
    %769 = vmatpush.bf16.msra.mxu0 %v752
    %770 = vmatpush.bf16.msra.mxu0 %v751
    %771 = vmatpush.bf16.msra.mxu0 %v750
    %772 = vmatpush.bf16.msra.mxu0 %v749
    %773 = vmatmul.f32.gmra.mxu0 %v757
    %v774 = vpop.f32.mrf.mxu0
    %v775 = vadd.f32 0.0, %v774
    %776 = vmatmul.f32.gmra.mxu0 %v759
    %v777 = vpop.f32.mrf.mxu0
    %v778 = vadd.f32 0.0, %v777
    %779 = vmatmul.f32.gmra.mxu0 %v761
    %v780 = vpop.f32.mrf.mxu0
    %v781 = vadd.f32 0.0, %v780
    %782 = vmatmul.f32.gmra.mxu0 %v763
    %v783 = vpop.f32.mrf.mxu0
    %v784 = vadd.f32 0.0, %v783
    %785 = vdwg.mxu0
    %v786 = vadd.f32 %v721, %v775
    %v787 = vadd.f32 %v722, %v778
    %v788 = vadd.f32 %v723, %v781
    %v789 = vadd.f32 %v724, %v784
    %v790 = vld [vmem:[%s3 + $0x1] sm:$0x1]
    %v791 = vperm.slane %v790, 0
    %v792 = vadd.f32 %v786, %v791
    %v793 = vadd.f32 %v787, %v791
    %v794 = vadd.f32 %v788, %v791
    %v795 = vadd.f32 %v789, %v791
    %v796 = vmax.f32 %v792, 0.0
    %v797 = vmax.f32 %v793, 0.0
    %v798 = vmax.f32 %v794, 0.0
    %v799 = vmax.f32 %v795, 0.0
    %v800 = vadd.f32 %v796, %v797
    %v801 = vrot.slane %v800, 4
    %v802 = vadd.f32 %v800, %v801
    %v803 = vrot.slane %v802, 2
    %v804 = vadd.f32 %v802, %v803
    %v805 = vrot.slane %v804, 1
    %v806 = vadd.f32 %v804, %v805
    %v807 = vadd.f32 %v798, %v799
    %v808 = vrot.slane %v807, 4
    %v809 = vadd.f32 %v807, %v808
    %v810 = vrot.slane %v809, 2
    %v811 = vadd.f32 %v809, %v810
    %v812 = vrot.slane %v811, 1
    %v813 = vadd.f32 %v811, %v812
    %v814 = vld [vmem:[%s1] sm:$0x3]
    %v815 = vld [vmem:[%s3 + $0x8] sm:$0xff]
    %v816 = vld [vmem:[%s3 + $0x2] sm:$0x1]
    %v817 = vperm.slane %v816, 0
    %vm818 = vcmask 64512
    %v820 = vsel %vm818, %v814, 0
    %822 = vmatpush.msra.mxu0 0.0
    %823 = vmatpush.msra.mxu0 0.0
    %824 = vmatpush.msra.mxu0 0.0
    %825 = vmatpush.msra.mxu0 0.0
    %826 = vmatpush.msra.mxu0 0.0
    %827 = vmatpush.msra.mxu0 0.0
    %828 = vmatpush.msra.mxu0 0.0
    %829 = vmatpush.msra.mxu0 0.0
    %830 = vmatpush.msra.mxu0 0.0
    %831 = vmatpush.msra.mxu0 0.0
    %832 = vmatpush.msra.mxu0 0.0
    %833 = vmatpush.msra.mxu0 0.0
    %834 = vmatpush.msra.mxu0 0.0
    %835 = vmatpush.msra.mxu0 0.0
    %836 = vmatpush.msra.mxu0 0.0
    %837 = vmatpush.msra.mxu0 %v815
    %838 = vmatmul.f32.gmra.mxu0 %v820
    %v839 = vpop.f32.mrf.mxu0
    %v840 = vadd.f32 %v817, %v839
    %841 = vdwg.mxu0
    %v842 = vld [vmem:[#allocation2 + $0x140] sm:$0xf]
    %v843 = vld [vmem:[#allocation2 + $0x144] sm:$0xf]
    %v844 = vld [vmem:[#allocation2 + $0x148] sm:$0xf]
    %v845 = vld [vmem:[#allocation2 + $0x14c] sm:$0xf]
    %v846 = vld [vmem:[#allocation2 + $0x150] sm:$0xf]
    %v847 = vld [vmem:[#allocation2 + $0x154] sm:$0xf]
    %v848 = vld [vmem:[#allocation2 + $0x158] sm:$0xf]
    %v849 = vld [vmem:[#allocation2 + $0x15c] sm:$0xf]
    %v850 = vld [vmem:[#allocation2 + $0x160] sm:$0xf]
    %v851 = vld [vmem:[#allocation2 + $0x164] sm:$0xf]
    %v852 = vld [vmem:[#allocation2 + $0x168] sm:$0xf]
    %v853 = vld [vmem:[#allocation2 + $0x16c] sm:$0xf]
    %v854 = vld [vmem:[#allocation2 + $0x170] sm:$0xf]
    %v855 = vld [vmem:[#allocation2 + $0x174] sm:$0xf]
    %v856 = vld [vmem:[#allocation2 + $0x178] sm:$0xf]
    %v857 = vld [vmem:[#allocation2 + $0x17c] sm:$0xf]
    %v858 = vld [vmem:[#allocation2 + $0x180] sm:$0xf]
    %v859 = vld [vmem:[#allocation2 + $0x184] sm:$0xf]
    %v860 = vld [vmem:[#allocation2 + $0x188] sm:$0xf]
    %v861 = vld [vmem:[#allocation2 + $0x18c] sm:$0xf]
    %v862 = vld [vmem:[#allocation2 + $0x190] sm:$0xf]
    %v863 = vld [vmem:[#allocation2 + $0x194] sm:$0xf]
    %v864 = vld [vmem:[#allocation2 + $0x198] sm:$0xf]
    %v865 = vld [vmem:[#allocation2 + $0x19c] sm:$0xf]
    %v866 = vld [vmem:[#allocation2 + $0x1a0] sm:$0xf]
    %v867 = vld [vmem:[#allocation2 + $0x1a4] sm:$0xf]
    %v868 = vld [vmem:[#allocation2 + $0x1a8] sm:$0xf]
    %v869 = vld [vmem:[#allocation2 + $0x1ac] sm:$0xf]
    %v870 = vld [vmem:[#allocation2 + $0x1b0] sm:$0xf]
    %v871 = vld [vmem:[#allocation2 + $0x1b4] sm:$0xf]
    %v872 = vld [vmem:[#allocation2 + $0x1b8] sm:$0xf]
    %v873 = vld [vmem:[#allocation2 + $0x1bc] sm:$0xf]
    %vm876 = vcmask 1041409
    %v877 = vsel %vm876, %v813, %v806
    %v895 = vunpack.c.l.b16 %v858
    %v896 = vunpack.c.l.b16 %v859
    %v897 = vunpack.c.l.b16 %v860
    %v898 = vunpack.c.l.b16 %v861
    %v899 = vunpack.c.l.b16 %v862
    %v900 = vunpack.c.l.b16 %v863
    %v901 = vunpack.c.l.b16 %v864
    %v902 = vunpack.c.l.b16 %v865
    %v903 = vunpack.c.l.b16 %v866
    %v904 = vunpack.c.l.b16 %v867
    %v905 = vunpack.c.l.b16 %v868
    %v906 = vunpack.c.l.b16 %v869
    %v907 = vunpack.c.l.b16 %v870
    %v908 = vunpack.c.l.b16 %v871
    %v909 = vunpack.c.l.b16 %v872
    %v910 = vunpack.c.l.b16 %v873
    %v911 = vpack.c.b16 %v896, %v895
    %v912 = vpack.c.b16 %v898, %v897
    %v913 = vpack.c.b16 %v900, %v899
    %v914 = vpack.c.b16 %v902, %v901
    %v915 = vpack.c.b16 %v904, %v903
    %v916 = vpack.c.b16 %v906, %v905
    %v917 = vpack.c.b16 %v908, %v907
    %v918 = vpack.c.b16 %v910, %v909
    %927 = vmatpush.bf16.msra.mxu0 %v918
    %928 = vmatpush.bf16.msra.mxu0 %v917
    %929 = vmatpush.bf16.msra.mxu0 %v916
    %930 = vmatpush.bf16.msra.mxu0 %v915
    %931 = vmatpush.bf16.msra.mxu0 %v914
    %932 = vmatpush.bf16.msra.mxu0 %v913
    %933 = vmatpush.bf16.msra.mxu0 %v912
    %934 = vmatpush.bf16.msra.mxu0 %v911
    %935 = vmatmul.f32.gmra.mxu0 %v877
    %v936 = vpop.f32.mrf.mxu0
    %v937 = vadd.f32 0.0, %v936
    %938 = vdwg.mxu0
    %v941 = vsel %vm876, %v275, %v269
    %v959 = vunpack.c.l.b16 %v842
    %v960 = vunpack.c.l.b16 %v843
    %v961 = vunpack.c.l.b16 %v844
    %v962 = vunpack.c.l.b16 %v845
    %v963 = vunpack.c.l.b16 %v846
    %v964 = vunpack.c.l.b16 %v847
    %v965 = vunpack.c.l.b16 %v848
    %v966 = vunpack.c.l.b16 %v849
    %v967 = vunpack.c.l.b16 %v850
    %v968 = vunpack.c.l.b16 %v851
    %v969 = vunpack.c.l.b16 %v852
    %v970 = vunpack.c.l.b16 %v853
    %v971 = vunpack.c.l.b16 %v854
    %v972 = vunpack.c.l.b16 %v855
    %v973 = vunpack.c.l.b16 %v856
    %v974 = vunpack.c.l.b16 %v857
    %v975 = vpack.c.b16 %v960, %v959
    %v976 = vpack.c.b16 %v962, %v961
    %v977 = vpack.c.b16 %v964, %v963
    %v978 = vpack.c.b16 %v966, %v965
    %v979 = vpack.c.b16 %v968, %v967
    %v980 = vpack.c.b16 %v970, %v969
    %v981 = vpack.c.b16 %v972, %v971
    %v982 = vpack.c.b16 %v974, %v973
    %991 = vmatpush.bf16.msra.mxu0 %v982
    %992 = vmatpush.bf16.msra.mxu0 %v981
    %993 = vmatpush.bf16.msra.mxu0 %v980
    %994 = vmatpush.bf16.msra.mxu0 %v979
    %995 = vmatpush.bf16.msra.mxu0 %v978
    %996 = vmatpush.bf16.msra.mxu0 %v977
    %997 = vmatpush.bf16.msra.mxu0 %v976
    %998 = vmatpush.bf16.msra.mxu0 %v975
    %999 = vmatmul.f32.gmra.mxu0 %v941
    %v1000 = vpop.f32.mrf.mxu0
    %v1001 = vadd.f32 %v937, %v1000
    %1002 = vdwg.mxu0
    %v1003 = vld [vmem:[#allocation2 + $0x1c0] sm:$0xf]
    %v1004 = vld [vmem:[#allocation2 + $0x1c4] sm:$0xf]
    %v1005 = vld [vmem:[#allocation2 + $0x1c8] sm:$0xf]
    %v1006 = vld [vmem:[#allocation2 + $0x1cc] sm:$0xf]
    %v1007 = vld [vmem:[#allocation2 + $0x1d0] sm:$0xf]
    %v1008 = vld [vmem:[#allocation2 + $0x1d4] sm:$0xf]
    %v1009 = vld [vmem:[#allocation2 + $0x1d8] sm:$0xf]
    %v1010 = vld [vmem:[#allocation2 + $0x1dc] sm:$0xf]
    %v1011 = vld [vmem:[#allocation2 + $0x1e0] sm:$0xf]
    %v1012 = vld [vmem:[#allocation2 + $0x1e4] sm:$0xf]
    %v1013 = vld [vmem:[#allocation2 + $0x1e8] sm:$0xf]
    %v1014 = vld [vmem:[#allocation2 + $0x1ec] sm:$0xf]
    %v1015 = vld [vmem:[#allocation2 + $0x1f0] sm:$0xf]
    %v1016 = vld [vmem:[#allocation2 + $0x1f4] sm:$0xf]
    %v1017 = vld [vmem:[#allocation2 + $0x1f8] sm:$0xf]
    %v1018 = vld [vmem:[#allocation2 + $0x1fc] sm:$0xf]
    %v1035 = vunpack.c.l.b16 %v1003
    %v1036 = vunpack.c.l.b16 %v1004
    %v1037 = vunpack.c.l.b16 %v1005
    %v1038 = vunpack.c.l.b16 %v1006
    %v1039 = vunpack.c.l.b16 %v1007
    %v1040 = vunpack.c.l.b16 %v1008
    %v1041 = vunpack.c.l.b16 %v1009
    %v1042 = vunpack.c.l.b16 %v1010
    %v1043 = vunpack.c.l.b16 %v1011
    %v1044 = vunpack.c.l.b16 %v1012
    %v1045 = vunpack.c.l.b16 %v1013
    %v1046 = vunpack.c.l.b16 %v1014
    %v1047 = vunpack.c.l.b16 %v1015
    %v1048 = vunpack.c.l.b16 %v1016
    %v1049 = vunpack.c.l.b16 %v1017
    %v1050 = vunpack.c.l.b16 %v1018
    %v1051 = vpack.c.b16 %v1036, %v1035
    %v1052 = vpack.c.b16 %v1038, %v1037
    %v1053 = vpack.c.b16 %v1040, %v1039
    %v1054 = vpack.c.b16 %v1042, %v1041
    %v1055 = vpack.c.b16 %v1044, %v1043
    %v1056 = vpack.c.b16 %v1046, %v1045
    %v1057 = vpack.c.b16 %v1048, %v1047
    %v1058 = vpack.c.b16 %v1050, %v1049
    %1067 = vmatpush.bf16.msra.mxu0 %v1058
    %1068 = vmatpush.bf16.msra.mxu0 %v1057
    %1069 = vmatpush.bf16.msra.mxu0 %v1056
    %1070 = vmatpush.bf16.msra.mxu0 %v1055
    %1071 = vmatpush.bf16.msra.mxu0 %v1054
    %1072 = vmatpush.bf16.msra.mxu0 %v1053
    %1073 = vmatpush.bf16.msra.mxu0 %v1052
    %1074 = vmatpush.bf16.msra.mxu0 %v1051
    %1075 = vmatmul.f32.gmra.mxu0 %v840
    %v1076 = vpop.f32.mrf.mxu0
    %v1077 = vadd.f32 0.0, %v1076
    %1078 = vdwg.mxu0
    %v1079 = vadd.f32 %v1001, %v1077
    %v1080 = vld [vmem:[%s3 + $0x3] sm:$0x1]
    %v1081 = vperm.slane %v1080, 0
    %v1082 = vadd.f32 %v1079, %v1081
    %v1083 = vmax.f32 %v1082, 0.0
    %v1084 = vld [vmem:[#allocation2 + $0x200] sm:$0xf]
    %v1085 = vld [vmem:[#allocation2 + $0x204] sm:$0xf]
    %v1086 = vld [vmem:[#allocation2 + $0x208] sm:$0xf]
    %v1087 = vld [vmem:[#allocation2 + $0x20c] sm:$0xf]
    %v1088 = vld [vmem:[#allocation2 + $0x210] sm:$0xf]
    %v1089 = vld [vmem:[#allocation2 + $0x214] sm:$0xf]
    %v1090 = vld [vmem:[#allocation2 + $0x218] sm:$0xf]
    %v1091 = vld [vmem:[#allocation2 + $0x21c] sm:$0xf]
    %v1092 = vld [vmem:[#allocation2 + $0x220] sm:$0xf]
    %v1093 = vld [vmem:[#allocation2 + $0x224] sm:$0xf]
    %v1094 = vld [vmem:[#allocation2 + $0x228] sm:$0xf]
    %v1095 = vld [vmem:[#allocation2 + $0x22c] sm:$0xf]
    %v1096 = vld [vmem:[#allocation2 + $0x230] sm:$0xf]
    %v1097 = vld [vmem:[#allocation2 + $0x234] sm:$0xf]
    %v1098 = vld [vmem:[#allocation2 + $0x238] sm:$0xf]
    %v1099 = vld [vmem:[#allocation2 + $0x23c] sm:$0xf]
    %v1100 = vld [vmem:[%s3 + $0x4] sm:$0x1]
    %v1101 = vperm.slane %v1100, 0
    %v1118 = vunpack.c.l.b16 %v1084
    %v1119 = vunpack.c.l.b16 %v1085
    %v1120 = vunpack.c.l.b16 %v1086
    %v1121 = vunpack.c.l.b16 %v1087
    %v1122 = vunpack.c.l.b16 %v1088
    %v1123 = vunpack.c.l.b16 %v1089
    %v1124 = vunpack.c.l.b16 %v1090
    %v1125 = vunpack.c.l.b16 %v1091
    %v1126 = vunpack.c.l.b16 %v1092
    %v1127 = vunpack.c.l.b16 %v1093
    %v1128 = vunpack.c.l.b16 %v1094
    %v1129 = vunpack.c.l.b16 %v1095
    %v1130 = vunpack.c.l.b16 %v1096
    %v1131 = vunpack.c.l.b16 %v1097
    %v1132 = vunpack.c.l.b16 %v1098
    %v1133 = vunpack.c.l.b16 %v1099
    %v1134 = vpack.c.b16 %v1119, %v1118
    %v1135 = vpack.c.b16 %v1121, %v1120
    %v1136 = vpack.c.b16 %v1123, %v1122
    %v1137 = vpack.c.b16 %v1125, %v1124
    %v1138 = vpack.c.b16 %v1127, %v1126
    %v1139 = vpack.c.b16 %v1129, %v1128
    %v1140 = vpack.c.b16 %v1131, %v1130
    %v1141 = vpack.c.b16 %v1133, %v1132
    %1150 = vmatpush.bf16.msra.mxu0 %v1141
    %1151 = vmatpush.bf16.msra.mxu0 %v1140
    %1152 = vmatpush.bf16.msra.mxu0 %v1139
    %1153 = vmatpush.bf16.msra.mxu0 %v1138
    %1154 = vmatpush.bf16.msra.mxu0 %v1137
    %1155 = vmatpush.bf16.msra.mxu0 %v1136
    %1156 = vmatpush.bf16.msra.mxu0 %v1135
    %1157 = vmatpush.bf16.msra.mxu0 %v1134
    %1158 = vmatmul.f32.gmra.mxu0 %v1083
    %v1159 = vpop.f32.mrf.mxu0
    %v1160 = vadd.f32 %v1101, %v1159
    %1161 = vdwg.mxu0
    %1162 = vst [vmem:[%s4] sm:$0x3] %v1160
    // Predicated region
    $region22: #{three_inputs_net.1} parent=1 // pred_check
      _
    $region23: #{three_inputs_net.1} parent=1 // pred_check_branch
      %1164 = sbr.rel (0) target = $region25
    $region24: #{three_inputs_net.1} parent=1 // pred_region
      _
    $region25: #{three_inputs_net.1} parent=1 // pred_fallthru
      _
    // Predicated region
    $region26: #{three_inputs_net.1} parent=1 // pred_check
      _
    $region27: #{three_inputs_net.1} parent=1 // pred_check_branch
      %1166 = sbr.rel (0) target = $region29
    $region28: #{three_inputs_net.1} parent=1 // pred_region
      _
    $region29: #{three_inputs_net.1} parent=1 // pred_fallthru
      _
    %1167 = vsyncpa [#allocation3], 1

</llo_original>
